<compile_context>
chip_gen: v7x
topology: tpu7x:2x2x1
jax: 0.10.0
libtpu: 0.0.40
codegen_flags: <defaults>
</compile_context>

<pallas_src>
import functools

import jax
import jax.numpy as jnp
from jax.experimental import pallas as pl
from jax.experimental.pallas import tpu as pltpu


def _elu(x):
    # ELU, alpha=1.0 (PyTorch default): x if x > 0 else exp(x) - 1
    return jnp.where(x > 0, x, jnp.exp(jnp.minimum(x, 0.0)) - 1.0)


def _softplus(x):
    # PyTorch nn.Softplus(beta=1, threshold=20): linear above the threshold,
    # log(1 + exp(x)) below (exp argument clamped so it never overflows).
    return jnp.where(x > 20.0, x, jnp.log(1.0 + jnp.exp(jnp.minimum(x, 20.0))))


def _round_up(n, m):
    return ((n + m - 1) // m) * m


def mlp_decoder_kernel(x_ref, adj_ref,
                       w1x_ref, w1a_ref, b1_ref,
                       w2_ref, b2_ref,
                       w3_ref, b3_ref,
                       wh_ref, bh_ref,
                       mean_ref, cov_ref,
                       *, out_dim):
    x = x_ref[...]       # (tm, dx)  f32
    adj = adj_ref[...]   # (tm, da)  f32

    # torch.cat([x, adj], -1) @ W1  ==  x @ W1[:dx] + adj @ W1[dx:]
    h = _elu(jnp.dot(x, w1x_ref[...], preferred_element_type=jnp.float32)
             + jnp.dot(adj, w1a_ref[...], preferred_element_type=jnp.float32)
             + b1_ref[...])
    h = _elu(jnp.dot(h, w2_ref[...], preferred_element_type=jnp.float32)
             + b2_ref[...])
    h = (jnp.dot(h, w3_ref[...], preferred_element_type=jnp.float32)
         + b3_ref[...])

    # Fused heads: one (hidden, 2*out) matmul instead of two (hidden, out) ones.
    heads = (jnp.dot(h, wh_ref[...], preferred_element_type=jnp.float32)
             + bh_ref[...])
    mean_ref[...] = heads[:, :out_dim].astype(mean_ref.dtype)
    cov_ref[...] = _softplus(heads[:, out_dim:]).astype(cov_ref.dtype)


def init_params(key, in_dim, out_dim, hidden_dim=32):
    """PyTorch-default-like uniform init, weights stored (fan_in, fan_out) so
    the kernel computes x @ W + b (== PyTorch x @ W.T + b)."""
    def linear(k, fin, fout):
        k1, k2 = jax.random.split(k)
        bound = 1.0 / jnp.sqrt(float(fin))
        w = jax.random.uniform(k1, (fin, fout), jnp.float32, -bound, bound)
        b = jax.random.uniform(k2, (1, fout), jnp.float32, -bound, bound)
        return w, b

    keys = jax.random.split(key, 5)
    w1, b1 = linear(keys[0], in_dim, hidden_dim)
    w2, b2 = linear(keys[1], hidden_dim, hidden_dim)
    w3, b3 = linear(keys[2], hidden_dim, hidden_dim)
    wm, bm = linear(keys[3], hidden_dim, out_dim)
    wc, bc = linear(keys[4], hidden_dim, out_dim)
    return dict(w1=w1, b1=b1, w2=w2, b2=b2, w3=w3, b3=b3,
                wm=wm, bm=bm, wc=wc, bc=bc)


@functools.partial(jax.jit, static_argnames=("tm",))
def mlp_decoder(x, adj, params, tm=512):
    """x: (..., dx), adj: (..., da) -> (mean, cov) each (..., out_dim)."""
    p = params
    dx = x.shape[-1]
    da = adj.shape[-1]
    in_dim, hidden = p["w1"].shape
    out_dim = p["wm"].shape[1]
    assert dx + da == in_dim
    lead = x.shape[:-1]

    # Fuse concat into the first layer (split W1) and the two heads into one
    # weight / bias (single MXU matmul for mean|cov).
    w1x = p["w1"][:dx]                                   # (dx, H)
    w1a = p["w1"][dx:]                                   # (da, H)
    wh = jnp.concatenate([p["wm"], p["wc"]], axis=1)     # (H, 2*out)
    bh = jnp.concatenate([p["bm"], p["bc"]], axis=1)     # (1, 2*out)

    xr = x.reshape(-1, dx)
    ar = adj.reshape(-1, da)
    M = xr.shape[0]

    # Large row tile (amortizes per-grid-step overhead); shrink for tiny
    # problems and pad the tail so any B*S works.
    tm = max(8, _round_up(tm, 8))
    tm_eff = min(tm, _round_up(M, 8))
    grid = pl.cdiv(M, tm_eff)
    M_pad = grid * tm_eff
    if M_pad != M:
        xr = jnp.pad(xr, ((0, M_pad - M), (0, 0)))
        ar = jnp.pad(ar, ((0, M_pad - M), (0, 0)))

    row_spec = lambda d: pl.BlockSpec((tm_eff, d), lambda i: (i, 0))
    full_spec = lambda a: pl.BlockSpec(a.shape, lambda i: (0, 0))

    cost = pl.CostEstimate(
        flops=2 * M_pad * (in_dim * hidden + 2 * hidden * hidden
                           + hidden * 2 * out_dim),
        transcendentals=M_pad * (2 * hidden + 2 * out_dim),
        bytes_accessed=4 * (M_pad * (in_dim + 2 * out_dim)
                            + in_dim * hidden + 2 * hidden * hidden
                            + 2 * hidden * out_dim + 3 * hidden + 2 * out_dim),
    )

    kernel = functools.partial(mlp_decoder_kernel, out_dim=out_dim)

    mean_flat, cov_flat = pl.pallas_call(
        kernel,
        out_shape=(jax.ShapeDtypeStruct((M_pad, out_dim), jnp.float32),
                   jax.ShapeDtypeStruct((M_pad, out_dim), jnp.float32)),
        grid=(grid,),
        in_specs=[row_spec(dx), row_spec(da),
                  full_spec(w1x), full_spec(w1a), full_spec(p["b1"]),
                  full_spec(p["w2"]), full_spec(p["b2"]),
                  full_spec(p["w3"]), full_spec(p["b3"]),
                  full_spec(wh), full_spec(bh)],
        out_specs=(row_spec(out_dim), row_spec(out_dim)),
        compiler_params=pltpu.CompilerParams(
            dimension_semantics=("parallel",)),
        cost_estimate=cost,
    )(xr, ar, w1x, w1a, p["b1"], p["w2"], p["b2"], p["w3"], p["b3"], wh, bh)

    out_shape = lead + (out_dim,)
    mean = mean_flat[:M].reshape(out_shape)
    cov = cov_flat[:M].reshape(out_shape)
    return mean, cov


def reference(x, adj, p):
    """Pure-JAX reference matching the PyTorch MLP_Decoder.forward."""
    xin = jnp.concatenate([x, adj], axis=-1)
    h = _elu(xin @ p["w1"] + p["b1"])
    h = _elu(h @ p["w2"] + p["b2"])
    h = h @ p["w3"] + p["b3"]
    mean = h @ p["wm"] + p["bm"]
    cov = _softplus(h @ p["wc"] + p["bc"])
    return mean, cov


if __name__ == "__main__":
    key = jax.random.PRNGKey(0)
    k_param, k_x, k_a, k_x2, k_a2 = jax.random.split(key, 5)

    # Small shapes consistent with the module: node features + adjacency
    # features, concatenated on the last dim.
    B, S, dx, da = 2, 8, 4, 4
    out_dim, hidden_dim = 4, 32
    in_dim = dx + da

    params = init_params(k_param, in_dim, out_dim, hidden_dim)
    x = jax.random.normal(k_x, (B, S, dx), dtype=jnp.float32)
    adj = jax.random.normal(k_a, (B, S, da), dtype=jnp.float32)

    mean, cov = mlp_decoder(x, adj, params)
    jax.block_until_ready((mean, cov))

    mean_ref, cov_ref = reference(x, adj, params)
    assert mean.shape == (B, S, out_dim) and cov.shape == (B, S, out_dim)
    assert jnp.allclose(mean, mean_ref, atol=1e-5, rtol=1e-5)
    assert jnp.allclose(cov, cov_ref, atol=1e-5, rtol=1e-5)
    assert bool(jnp.all(cov > 0))  # softplus output is strictly positive

    # Larger run: exercises the 512-row tiles, multi-step grid and padded tail.
    B2, S2 = 3, 700                      # M = 2100 -> grid of 5 tiles of 512
    x2 = jax.random.normal(k_x2, (B2, S2, dx), dtype=jnp.float32)
    adj2 = jax.random.normal(k_a2, (B2, S2, da), dtype=jnp.float32)
    mean2, cov2 = mlp_decoder(x2, adj2, params)
    jax.block_until_ready((mean2, cov2))
    mean2_ref, cov2_ref = reference(x2, adj2, params)
    assert jnp.allclose(mean2, mean2_ref, atol=1e-5, rtol=1e-5)
    assert jnp.allclose(cov2, cov2_ref, atol=1e-5, rtol=1e-5)

    print("KERNEL_OK")
</pallas_src>

<mosaic_0001>
module attributes {stable_mosaic.version = 11 : i64} {
  func.func @mlp_decoder_kernel(%arg0: i32, %arg1: memref<16x4xf32, #tpu.memory_space<vmem>>, %arg2: memref<16x4xf32, #tpu.memory_space<vmem>>, %arg3: memref<4x32xf32, #tpu.memory_space<vmem>>, %arg4: memref<4x32xf32, #tpu.memory_space<vmem>>, %arg5: memref<1x32xf32, #tpu.memory_space<vmem>>, %arg6: memref<32x32xf32, #tpu.memory_space<vmem>>, %arg7: memref<1x32xf32, #tpu.memory_space<vmem>>, %arg8: memref<32x32xf32, #tpu.memory_space<vmem>>, %arg9: memref<1x32xf32, #tpu.memory_space<vmem>>, %arg10: memref<32x8xf32, #tpu.memory_space<vmem>>, %arg11: memref<1x8xf32, #tpu.memory_space<vmem>>, %arg12: memref<16x4xf32, #tpu.memory_space<vmem>>, %arg13: memref<16x4xf32, #tpu.memory_space<vmem>>) attributes {dimension_semantics = [#tpu.dimension_semantics<parallel>], iteration_bounds = array<i64: 1>, scalar_prefetch = 0 : i64, scratch_operands = 0 : i64, tpu.core_type = #tpu.core_type<tc>, window_params = [{transform_indices = @transform_0, window_bounds = array<i64: 16, 4>}, {transform_indices = @transform_1, window_bounds = array<i64: 16, 4>}, {pipeline_mode = #tpu.pipeline_mode<synchronous>, transform_indices = @transform_2, window_bounds = array<i64: 4, 32>}, {pipeline_mode = #tpu.pipeline_mode<synchronous>, transform_indices = @transform_3, window_bounds = array<i64: 4, 32>}, {pipeline_mode = #tpu.pipeline_mode<synchronous>, transform_indices = @transform_4, window_bounds = array<i64: 1, 32>}, {pipeline_mode = #tpu.pipeline_mode<synchronous>, transform_indices = @transform_5, window_bounds = array<i64: 32, 32>}, {pipeline_mode = #tpu.pipeline_mode<synchronous>, transform_indices = @transform_6, window_bounds = array<i64: 1, 32>}, {pipeline_mode = #tpu.pipeline_mode<synchronous>, transform_indices = @transform_7, window_bounds = array<i64: 32, 32>}, {pipeline_mode = #tpu.pipeline_mode<synchronous>, transform_indices = @transform_8, window_bounds = array<i64: 1, 32>}, {pipeline_mode = #tpu.pipeline_mode<synchronous>, transform_indices = @transform_9, window_bounds = array<i64: 32, 8>}, {pipeline_mode = #tpu.pipeline_mode<synchronous>, transform_indices = @transform_10, window_bounds = array<i64: 1, 8>}, {transform_indices = @transform_11, window_bounds = array<i64: 16, 4>}, {transform_indices = @transform_12, window_bounds = array<i64: 16, 4>}]} {
    %c0 = arith.constant 0 : index
    %c0_0 = arith.constant 0 : index
    %0 = vector.load %arg1[%c0, %c0_0] : memref<16x4xf32, #tpu.memory_space<vmem>>, vector<16x4xf32>
    %c0_1 = arith.constant 0 : index
    %c0_2 = arith.constant 0 : index
    %1 = vector.load %arg2[%c0_1, %c0_2] : memref<16x4xf32, #tpu.memory_space<vmem>>, vector<16x4xf32>
    %c0_3 = arith.constant 0 : index
    %c0_4 = arith.constant 0 : index
    %2 = vector.load %arg3[%c0_3, %c0_4] : memref<4x32xf32, #tpu.memory_space<vmem>>, vector<4x32xf32>
    %cst = arith.constant dense<0.000000e+00> : vector<16x32xf32>
    %3 = tpu.matmul %0, %2, %cst {dimension_numbers = #tpu.dot_dimension_numbers<[1], [0], [0], [1], [0, 0, 1, 1], [], []>} : vector<16x4xf32>, vector<4x32xf32>, vector<16x32xf32> -> vector<16x32xf32>
    %c0_5 = arith.constant 0 : index
    %c0_6 = arith.constant 0 : index
    %4 = vector.load %arg4[%c0_5, %c0_6] : memref<4x32xf32, #tpu.memory_space<vmem>>, vector<4x32xf32>
    %cst_7 = arith.constant dense<0.000000e+00> : vector<16x32xf32>
    %5 = tpu.matmul %1, %4, %cst_7 {dimension_numbers = #tpu.dot_dimension_numbers<[1], [0], [0], [1], [0, 0, 1, 1], [], []>} : vector<16x4xf32>, vector<4x32xf32>, vector<16x32xf32> -> vector<16x32xf32>
    %6 = arith.addf %3, %5 : vector<16x32xf32>
    %c0_8 = arith.constant 0 : index
    %c0_9 = arith.constant 0 : index
    %7 = vector.load %arg5[%c0_8, %c0_9] : memref<1x32xf32, #tpu.memory_space<vmem>>, vector<1x32xf32>
    %8 = vector.broadcast %7 : vector<1x32xf32> to vector<16x32xf32>
    %9 = arith.addf %6, %8 : vector<16x32xf32>
    %cst_10 = arith.constant 0.000000e+00 : f32
    %10 = vector.broadcast %cst_10 : f32 to vector<16x32xf32>
    %11 = arith.cmpf ogt, %9, %10 : vector<16x32xf32>
    %cst_11 = arith.constant 0.000000e+00 : f32
    %12 = vector.broadcast %cst_11 : f32 to vector<16x32xf32>
    %13 = arith.minimumf %9, %12 : vector<16x32xf32>
    %14 = math.exp %13 : vector<16x32xf32>
    %cst_12 = arith.constant 1.000000e+00 : f32
    %15 = vector.broadcast %cst_12 : f32 to vector<16x32xf32>
    %16 = arith.subf %14, %15 : vector<16x32xf32>
    %17 = arith.select %11, %9, %16 : vector<16x32xi1>, vector<16x32xf32>
    %c0_13 = arith.constant 0 : index
    %c0_14 = arith.constant 0 : index
    %18 = vector.load %arg6[%c0_13, %c0_14] : memref<32x32xf32, #tpu.memory_space<vmem>>, vector<32x32xf32>
    %cst_15 = arith.constant dense<0.000000e+00> : vector<16x32xf32>
    %19 = tpu.matmul %17, %18, %cst_15 {dimension_numbers = #tpu.dot_dimension_numbers<[1], [0], [0], [1], [0, 0, 1, 1], [], []>} : vector<16x32xf32>, vector<32x32xf32>, vector<16x32xf32> -> vector<16x32xf32>
    %c0_16 = arith.constant 0 : index
    %c0_17 = arith.constant 0 : index
    %20 = vector.load %arg7[%c0_16, %c0_17] : memref<1x32xf32, #tpu.memory_space<vmem>>, vector<1x32xf32>
    %21 = vector.broadcast %20 : vector<1x32xf32> to vector<16x32xf32>
    %22 = arith.addf %19, %21 : vector<16x32xf32>
    %cst_18 = arith.constant 0.000000e+00 : f32
    %23 = vector.broadcast %cst_18 : f32 to vector<16x32xf32>
    %24 = arith.cmpf ogt, %22, %23 : vector<16x32xf32>
    %cst_19 = arith.constant 0.000000e+00 : f32
    %25 = vector.broadcast %cst_19 : f32 to vector<16x32xf32>
    %26 = arith.minimumf %22, %25 : vector<16x32xf32>
    %27 = math.exp %26 : vector<16x32xf32>
    %cst_20 = arith.constant 1.000000e+00 : f32
    %28 = vector.broadcast %cst_20 : f32 to vector<16x32xf32>
    %29 = arith.subf %27, %28 : vector<16x32xf32>
    %30 = arith.select %24, %22, %29 : vector<16x32xi1>, vector<16x32xf32>
    %c0_21 = arith.constant 0 : index
    %c0_22 = arith.constant 0 : index
    %31 = vector.load %arg8[%c0_21, %c0_22] : memref<32x32xf32, #tpu.memory_space<vmem>>, vector<32x32xf32>
    %cst_23 = arith.constant dense<0.000000e+00> : vector<16x32xf32>
    %32 = tpu.matmul %30, %31, %cst_23 {dimension_numbers = #tpu.dot_dimension_numbers<[1], [0], [0], [1], [0, 0, 1, 1], [], []>} : vector<16x32xf32>, vector<32x32xf32>, vector<16x32xf32> -> vector<16x32xf32>
    %c0_24 = arith.constant 0 : index
    %c0_25 = arith.constant 0 : index
    %33 = vector.load %arg9[%c0_24, %c0_25] : memref<1x32xf32, #tpu.memory_space<vmem>>, vector<1x32xf32>
    %34 = vector.broadcast %33 : vector<1x32xf32> to vector<16x32xf32>
    %35 = arith.addf %32, %34 : vector<16x32xf32>
    %c0_26 = arith.constant 0 : index
    %c0_27 = arith.constant 0 : index
    %36 = vector.load %arg10[%c0_26, %c0_27] : memref<32x8xf32, #tpu.memory_space<vmem>>, vector<32x8xf32>
    %cst_28 = arith.constant dense<0.000000e+00> : vector<16x8xf32>
    %37 = tpu.matmul %35, %36, %cst_28 {dimension_numbers = #tpu.dot_dimension_numbers<[1], [0], [0], [1], [0, 0, 1, 1], [], []>} : vector<16x32xf32>, vector<32x8xf32>, vector<16x8xf32> -> vector<16x8xf32>
    %c0_29 = arith.constant 0 : index
    %c0_30 = arith.constant 0 : index
    %38 = vector.load %arg11[%c0_29, %c0_30] : memref<1x8xf32, #tpu.memory_space<vmem>>, vector<1x8xf32>
    %39 = vector.broadcast %38 : vector<1x8xf32> to vector<16x8xf32>
    %40 = arith.addf %37, %39 : vector<16x8xf32>
    %41 = vector.extract_strided_slice %40 {offsets = [0, 0], sizes = [16, 4], strides = [1, 1]} : vector<16x8xf32> to vector<16x4xf32>
    %c0_31 = arith.constant 0 : index
    %c0_32 = arith.constant 0 : index
    %42 = vector.load %arg12[%c0_31, %c0_32] : memref<16x4xf32, #tpu.memory_space<vmem>>, vector<16x4xf32>
    tpu.vector_store %arg12[%c0_31, %c0_32], %41 {strides = array<i32>} : memref<16x4xf32, #tpu.memory_space<vmem>>, vector<16x4xf32>,
    %43 = vector.extract_strided_slice %40 {offsets = [0, 4], sizes = [16, 4], strides = [1, 1]} : vector<16x8xf32> to vector<16x4xf32>
    %cst_33 = arith.constant 2.000000e+01 : f32
    %44 = vector.broadcast %cst_33 : f32 to vector<16x4xf32>
    %45 = arith.cmpf ogt, %43, %44 : vector<16x4xf32>
    %cst_34 = arith.constant 2.000000e+01 : f32
    %46 = vector.broadcast %cst_34 : f32 to vector<16x4xf32>
    %47 = arith.minimumf %43, %46 : vector<16x4xf32>
    %48 = math.exp %47 : vector<16x4xf32>
    %cst_35 = arith.constant 1.000000e+00 : f32
    %49 = vector.broadcast %cst_35 : f32 to vector<16x4xf32>
    %50 = arith.addf %49, %48 : vector<16x4xf32>
    %51 = math.log %50 : vector<16x4xf32>
    %52 = arith.select %45, %43, %51 : vector<16x4xi1>, vector<16x4xf32>
    %c0_36 = arith.constant 0 : index
    %c0_37 = arith.constant 0 : index
    %53 = vector.load %arg13[%c0_36, %c0_37] : memref<16x4xf32, #tpu.memory_space<vmem>>, vector<16x4xf32>
    tpu.vector_store %arg13[%c0_36, %c0_37], %52 {strides = array<i32>} : memref<16x4xf32, #tpu.memory_space<vmem>>, vector<16x4xf32>,
    return
  }
  func.func @transform_0(%arg0: i32) -> (i32, i32) {
    %c0_i32 = arith.constant 0 : i32
    %c0_i32_0 = arith.constant 0 : i32
    return %arg0, %c0_i32 : i32, i32
  }
  func.func @transform_1(%arg0: i32) -> (i32, i32) {
    %c0_i32 = arith.constant 0 : i32
    %c0_i32_0 = arith.constant 0 : i32
    return %arg0, %c0_i32 : i32, i32
  }
  func.func @transform_2(%arg0: i32) -> (i32, i32) {
    %c0_i32 = arith.constant 0 : i32
    %c0_i32_0 = arith.constant 0 : i32
    %c0_i32_1 = arith.constant 0 : i32
    return %c0_i32, %c0_i32_0 : i32, i32
  }
  func.func @transform_3(%arg0: i32) -> (i32, i32) {
    %c0_i32 = arith.constant 0 : i32
    %c0_i32_0 = arith.constant 0 : i32
    %c0_i32_1 = arith.constant 0 : i32
    return %c0_i32, %c0_i32_0 : i32, i32
  }
  func.func @transform_4(%arg0: i32) -> (i32, i32) {
    %c0_i32 = arith.constant 0 : i32
    %c0_i32_0 = arith.constant 0 : i32
    %c0_i32_1 = arith.constant 0 : i32
    return %c0_i32, %c0_i32_0 : i32, i32
  }
  func.func @transform_5(%arg0: i32) -> (i32, i32) {
    %c0_i32 = arith.constant 0 : i32
    %c0_i32_0 = arith.constant 0 : i32
    %c0_i32_1 = arith.constant 0 : i32
    return %c0_i32, %c0_i32_0 : i32, i32
  }
  func.func @transform_6(%arg0: i32) -> (i32, i32) {
    %c0_i32 = arith.constant 0 : i32
    %c0_i32_0 = arith.constant 0 : i32
    %c0_i32_1 = arith.constant 0 : i32
    return %c0_i32, %c0_i32_0 : i32, i32
  }
  func.func @transform_7(%arg0: i32) -> (i32, i32) {
    %c0_i32 = arith.constant 0 : i32
    %c0_i32_0 = arith.constant 0 : i32
    %c0_i32_1 = arith.constant 0 : i32
    return %c0_i32, %c0_i32_0 : i32, i32
  }
  func.func @transform_8(%arg0: i32) -> (i32, i32) {
    %c0_i32 = arith.constant 0 : i32
    %c0_i32_0 = arith.constant 0 : i32
    %c0_i32_1 = arith.constant 0 : i32
    return %c0_i32, %c0_i32_0 : i32, i32
  }
  func.func @transform_9(%arg0: i32) -> (i32, i32) {
    %c0_i32 = arith.constant 0 : i32
    %c0_i32_0 = arith.constant 0 : i32
    %c0_i32_1 = arith.constant 0 : i32
    return %c0_i32, %c0_i32_0 : i32, i32
  }
  func.func @transform_10(%arg0: i32) -> (i32, i32) {
    %c0_i32 = arith.constant 0 : i32
    %c0_i32_0 = arith.constant 0 : i32
    %c0_i32_1 = arith.constant 0 : i32
    return %c0_i32, %c0_i32_0 : i32, i32
  }
  func.func @transform_11(%arg0: i32) -> (i32, i32) {
    %c0_i32 = arith.constant 0 : i32
    %c0_i32_0 = arith.constant 0 : i32
    return %arg0, %c0_i32 : i32, i32
  }
  func.func @transform_12(%arg0: i32) -> (i32, i32) {
    %c0_i32 = arith.constant 0 : i32
    %c0_i32_0 = arith.constant 0 : i32
    return %arg0, %c0_i32 : i32, i32
  }
}

</mosaic_0001>

<llo_original>
// kernel: mlp_decoder.1
$region0: #{mlp_decoder.1}
  #allocation0 [shape = 'u32[]', space=smem, size = 0x4, offset = 0x4, fixed_abs, tag = 'smem constant byte address 0x4 - core index']
  #allocation1 [shape = 'u32[144,128]{1,0:T(1,128)}', space=vmem, size = 0x12000, scoped, tag = 'internal scratch']
  %s0 = inlined_call_operand.vmem [shape: f32[16,4], index: 0, kind: input, shape index: {}]
  %s1 = inlined_call_operand.vmem [shape: f32[16,4], index: 1, kind: input, shape index: {}]
  %s2 = inlined_call_operand.vmem [shape: f32[4,32], index: 2, kind: input, shape index: {}]
  %s3 = inlined_call_operand.vmem [shape: f32[4,32], index: 3, kind: input, shape index: {}]
  %s4 = inlined_call_operand.vmem [shape: f32[1,32], index: 4, kind: input, shape index: {}]
  %s5 = inlined_call_operand.vmem [shape: f32[32,32], index: 5, kind: input, shape index: {}]
  %s6 = inlined_call_operand.vmem [shape: f32[1,32], index: 6, kind: input, shape index: {}]
  %s7 = inlined_call_operand.vmem [shape: f32[32,32], index: 7, kind: input, shape index: {}]
  %s8 = inlined_call_operand.vmem [shape: f32[1,32], index: 8, kind: input, shape index: {}]
  %s9 = inlined_call_operand.vmem [shape: f32[32,8], index: 9, kind: input, shape index: {}]
  %s10 = inlined_call_operand.vmem [shape: f32[1,8], index: 10, kind: input, shape index: {}]
  %s11 = inlined_call_operand.vmem [shape: f32[16,4], index: 11, kind: output, shape index: {0}]
  %s12 = inlined_call_operand.vmem [shape: f32[16,4], index: 12, kind: output, shape index: {1}]
  %13 = xla_tuple %s11, %s12
  %s14 = sld [smem:[#allocation0]]
  $region62: #{mlp_decoder.1} parent=0
    _
  %s16 = ssub.s32 1, %s14
  %s17 = scalar_select 0, %s16, %s14
  // Predicated region
  $region2: #{mlp_decoder.1} parent=0 // pred_check
    _
  $region3: #{mlp_decoder.1} parent=0 // pred_check_branch
    %19 = sbr.rel (0) target = $region5
  $region4: #{mlp_decoder.1} parent=0 // pred_region
    _
  $region5: #{mlp_decoder.1} parent=0 // pred_fallthru
    _
  // Predicated region
  $region6: #{mlp_decoder.1} parent=0 // pred_check
    _
  $region7: #{mlp_decoder.1} parent=0 // pred_check_branch
    %21 = sbr.rel (0) target = $region9
  $region8: #{mlp_decoder.1} parent=0 // pred_region
    _
  $region9: #{mlp_decoder.1} parent=0 // pred_fallthru
    _
  // Predicated region
  $region10: #{mlp_decoder.1} parent=0 // pred_check
    _
  $region11: #{mlp_decoder.1} parent=0 // pred_check_branch
    %23 = sbr.rel (0) target = $region13
  $region12: #{mlp_decoder.1} parent=0 // pred_region
    _
  $region13: #{mlp_decoder.1} parent=0 // pred_fallthru
    _
  // Predicated region
  $region14: #{mlp_decoder.1} parent=0 // pred_check
    _
  $region15: #{mlp_decoder.1} parent=0 // pred_check_branch
    %25 = sbr.rel (0) target = $region17
  $region16: #{mlp_decoder.1} parent=0 // pred_region
    _
  $region17: #{mlp_decoder.1} parent=0 // pred_fallthru
    _
  // Predicated region
  $region18: #{mlp_decoder.1} parent=0 // pred_check
    _
  $region19: #{mlp_decoder.1} parent=0 // pred_check_branch
    %27 = sbr.rel (0) target = $region21
  $region20: #{mlp_decoder.1} parent=0 // pred_region
    _
  $region21: #{mlp_decoder.1} parent=0 // pred_fallthru
    _
  // Predicated region
  $region22: #{mlp_decoder.1} parent=0 // pred_check
    _
  $region23: #{mlp_decoder.1} parent=0 // pred_check_branch
    %29 = sbr.rel (0) target = $region25
  $region24: #{mlp_decoder.1} parent=0 // pred_region
    _
  $region25: #{mlp_decoder.1} parent=0 // pred_fallthru
    _
  // Predicated region
  $region26: #{mlp_decoder.1} parent=0 // pred_check
    _
  $region27: #{mlp_decoder.1} parent=0 // pred_check_branch
    %31 = sbr.rel (0) target = $region29
  $region28: #{mlp_decoder.1} parent=0 // pred_region
    _
  $region29: #{mlp_decoder.1} parent=0 // pred_fallthru
    _
  // Predicated region
  $region30: #{mlp_decoder.1} parent=0 // pred_check
    _
  $region31: #{mlp_decoder.1} parent=0 // pred_check_branch
    %33 = sbr.rel (0) target = $region33
  $region32: #{mlp_decoder.1} parent=0 // pred_region
    _
  $region33: #{mlp_decoder.1} parent=0 // pred_fallthru
    _
  // Predicated region
  $region34: #{mlp_decoder.1} parent=0 // pred_check
    _
  $region35: #{mlp_decoder.1} parent=0 // pred_check_branch
    %35 = sbr.rel (0) target = $region37
  $region36: #{mlp_decoder.1} parent=0 // pred_region
    _
  $region37: #{mlp_decoder.1} parent=0 // pred_fallthru
    _
  // Predicated region
  $region38: #{mlp_decoder.1} parent=0 // pred_check
    _
  $region39: #{mlp_decoder.1} parent=0 // pred_check_branch
    %37 = sbr.rel (0) target = $region41
  $region40: #{mlp_decoder.1} parent=0 // pred_region
    _
  $region41: #{mlp_decoder.1} parent=0 // pred_fallthru
    _
  // Predicated region
  $region42: #{mlp_decoder.1} parent=0 // pred_check
    _
  $region43: #{mlp_decoder.1} parent=0 // pred_check_branch
    %39 = sbr.rel (0) target = $region45
  $region44: #{mlp_decoder.1} parent=0 // pred_region
    _
  $region45: #{mlp_decoder.1} parent=0 // pred_fallthru
    _
  %v40 = vld [vmem:[%s0] sm:$0xff]
  %v41 = vld [vmem:[%s0 + $0x8] sm:$0xff]
  %v42 = vld [vmem:[%s1] sm:$0xff]
  %v43 = vld [vmem:[%s1 + $0x8] sm:$0xff]
  %v44 = vld [vmem:[%s2] sm:$0xf]
  %v45 = vld [vmem:[%s3] sm:$0xf]
  %vm46 = vcmask 31744
  %v48 = vsel %vm46, %v42, 0
  %v51 = vsel %vm46, %v43, 0
  %vm53 = vcmask 1043456
  %v55 = vsel %vm53, %v45, 0
  %57 = vmatprep.subr.mxu0 0.0
  %58 = vmatpush1.msra.mxu0 %v55
  %59 = vmatprep.subr.mxu0 0.0
  %60 = vmatpush1.msra.mxu0 0.0
  %61 = vmatprep.subr.mxu0 0.0
  %62 = vmatpush1.msra.mxu0 0.0
  %63 = vmatprep.subr.mxu0 0.0
  %64 = vmatpush1.msra.mxu0 0.0
  %65 = vmatprep.subr.mxu0 0.0
  %66 = vmatpush1.msra.mxu0 0.0
  %67 = vmatprep.subr.mxu0 0.0
  %68 = vmatpush1.msra.mxu0 0.0
  %69 = vmatprep.subr.mxu0 0.0
  %70 = vmatpush1.msra.mxu0 0.0
  %71 = vmatprep.subr.mxu0 0.0
  %72 = vmatpush1.msra.mxu0 0.0
  %73 = vmatprep.subr.mxu0 0.0
  %74 = vmatpush1.msra.mxu0 0.0
  %75 = vmatprep.subr.mxu0 0.0
  %76 = vmatpush1.msra.mxu0 0.0
  %77 = vmatprep.subr.mxu0 0.0
  %78 = vmatpush1.msra.mxu0 0.0
  %79 = vmatprep.subr.mxu0 0.0
  %80 = vmatpush1.msra.mxu0 0.0
  %81 = vmatprep.subr.mxu0 0.0
  %82 = vmatpush1.msra.mxu0 0.0
  %83 = vmatprep.subr.mxu0 0.0
  %84 = vmatpush1.msra.mxu0 0.0
  %85 = vmatprep.subr.mxu0 0.0
  %86 = vmatpush1.msra.mxu0 0.0
  %87 = vmatprep.subr.mxu0 0.0
  %88 = vmatpush1.msra.mxu0 0.0
  %89 = vmatprep.subr.mxu0 0.0
  %90 = vmatpush1.msra.mxu0 0.0
  %91 = vmatprep.subr.mxu0 0.0
  %92 = vmatpush1.msra.mxu0 0.0
  %93 = vmatprep.subr.mxu0 0.0
  %94 = vmatpush1.msra.mxu0 0.0
  %95 = vmatprep.subr.mxu0 0.0
  %96 = vmatpush1.msra.mxu0 0.0
  %97 = vmatprep.subr.mxu0 0.0
  %98 = vmatpush1.msra.mxu0 0.0
  %99 = vmatprep.subr.mxu0 0.0
  %100 = vmatpush1.msra.mxu0 0.0
  %101 = vmatprep.subr.mxu0 0.0
  %102 = vmatpush1.msra.mxu0 0.0
  %103 = vmatprep.subr.mxu0 0.0
  %104 = vmatpush1.msra.mxu0 0.0
  %105 = vmatprep.subr.mxu0 0.0
  %106 = vmatpush1.msra.mxu0 0.0
  %107 = vmatprep.subr.mxu0 0.0
  %108 = vmatpush1.msra.mxu0 0.0
  %109 = vmatprep.subr.mxu0 0.0
  %110 = vmatpush1.msra.mxu0 0.0
  %111 = vmatprep.subr.mxu0 0.0
  %112 = vmatpush1.msra.mxu0 0.0
  %113 = vmatprep.subr.mxu0 0.0
  %114 = vmatpush1.msra.mxu0 0.0
  %115 = vmatprep.subr.mxu0 0.0
  %116 = vmatpush1.msra.mxu0 0.0
  %117 = vmatprep.subr.mxu0 0.0
  %118 = vmatpush1.msra.mxu0 0.0
  %119 = vmatprep.subr.mxu0 0.0
  %120 = vmatpush1.msra.mxu0 0.0
  %121 = vmatprep.mubr.f32.mxu0 0.0
  %122 = vmatmul.mubr.f32.gmra.mrb[0].mxu0 %v48
  %v123 = vpop.f32.mrb[0].mxu0
  %v124 = vadd.f32 0.0, %v123
  %v125 = vpop.f32.mrb[0].mxu0
  %126 = vmatprep.mubr.f32.mxu0 0.0
  %127 = vmatmul.mubr.f32.gmra.mrb[0].mxu0 %v51
  %v128 = vpop.f32.mrb[0].mxu0
  %v129 = vadd.f32 0.0, %v128
  %v130 = vpop.f32.mrb[0].mxu0
  %131 = vdwg.mxu0
  %v133 = vsel %vm46, %v40, 0
  %v136 = vsel %vm46, %v41, 0
  %v139 = vsel %vm53, %v44, 0
  %141 = vmatprep.subr.mxu0 0.0
  %142 = vmatpush1.msra.mxu0 %v139
  %143 = vmatprep.subr.mxu0 0.0
  %144 = vmatpush1.msra.mxu0 0.0
  %145 = vmatprep.subr.mxu0 0.0
  %146 = vmatpush1.msra.mxu0 0.0
  %147 = vmatprep.subr.mxu0 0.0
  %148 = vmatpush1.msra.mxu0 0.0
  %149 = vmatprep.subr.mxu0 0.0
  %150 = vmatpush1.msra.mxu0 0.0
  %151 = vmatprep.subr.mxu0 0.0
  %152 = vmatpush1.msra.mxu0 0.0
  %153 = vmatprep.subr.mxu0 0.0
  %154 = vmatpush1.msra.mxu0 0.0
  %155 = vmatprep.subr.mxu0 0.0
  %156 = vmatpush1.msra.mxu0 0.0
  %157 = vmatprep.subr.mxu0 0.0
  %158 = vmatpush1.msra.mxu0 0.0
  %159 = vmatprep.subr.mxu0 0.0
  %160 = vmatpush1.msra.mxu0 0.0
  %161 = vmatprep.subr.mxu0 0.0
  %162 = vmatpush1.msra.mxu0 0.0
  %163 = vmatprep.subr.mxu0 0.0
  %164 = vmatpush1.msra.mxu0 0.0
  %165 = vmatprep.subr.mxu0 0.0
  %166 = vmatpush1.msra.mxu0 0.0
  %167 = vmatprep.subr.mxu0 0.0
  %168 = vmatpush1.msra.mxu0 0.0
  %169 = vmatprep.subr.mxu0 0.0
  %170 = vmatpush1.msra.mxu0 0.0
  %171 = vmatprep.subr.mxu0 0.0
  %172 = vmatpush1.msra.mxu0 0.0
  %173 = vmatprep.subr.mxu0 0.0
  %174 = vmatpush1.msra.mxu0 0.0
  %175 = vmatprep.subr.mxu0 0.0
  %176 = vmatpush1.msra.mxu0 0.0
  %177 = vmatprep.subr.mxu0 0.0
  %178 = vmatpush1.msra.mxu0 0.0
  %179 = vmatprep.subr.mxu0 0.0
  %180 = vmatpush1.msra.mxu0 0.0
  %181 = vmatprep.subr.mxu0 0.0
  %182 = vmatpush1.msra.mxu0 0.0
  %183 = vmatprep.subr.mxu0 0.0
  %184 = vmatpush1.msra.mxu0 0.0
  %185 = vmatprep.subr.mxu0 0.0
  %186 = vmatpush1.msra.mxu0 0.0
  %187 = vmatprep.subr.mxu0 0.0
  %188 = vmatpush1.msra.mxu0 0.0
  %189 = vmatprep.subr.mxu0 0.0
  %190 = vmatpush1.msra.mxu0 0.0
  %191 = vmatprep.subr.mxu0 0.0
  %192 = vmatpush1.msra.mxu0 0.0
  %193 = vmatprep.subr.mxu0 0.0
  %194 = vmatpush1.msra.mxu0 0.0
  %195 = vmatprep.subr.mxu0 0.0
  %196 = vmatpush1.msra.mxu0 0.0
  %197 = vmatprep.subr.mxu0 0.0
  %198 = vmatpush1.msra.mxu0 0.0
  %199 = vmatprep.subr.mxu0 0.0
  %200 = vmatpush1.msra.mxu0 0.0
  %201 = vmatprep.subr.mxu0 0.0
  %202 = vmatpush1.msra.mxu0 0.0
  %203 = vmatprep.subr.mxu0 0.0
  %204 = vmatpush1.msra.mxu0 0.0
  %205 = vmatprep.mubr.f32.mxu0 0.0
  %206 = vmatmul.mubr.f32.gmra.mrb[0].mxu0 %v133
  %v207 = vpop.f32.mrb[0].mxu0
  %v208 = vadd.f32 %v124, %v207
  %v209 = vpop.f32.mrb[0].mxu0
  %210 = vmatprep.mubr.f32.mxu0 0.0
  %211 = vmatmul.mubr.f32.gmra.mrb[0].mxu0 %v136
  %v212 = vpop.f32.mrb[0].mxu0
  %v213 = vadd.f32 %v129, %v212
  %v214 = vpop.f32.mrb[0].mxu0
  %215 = vdwg.mxu0
  %v216 = vld [vmem:[%s4] sm:$0x1]
  %v218 = vlaneseq
  %v219 = vshrl.u32 %v218, 7
  %v220 = vsub.s32 0, %v219
  %v221 = vrot.slane %v216, %v220
  %v223 = vadd.f32 %v208, %v221
  %v224 = vadd.f32 %v213, %v221
  %vm225 = vcmp.gt.f32.partialorder %v223, 0.0
  %vm226 = vcmp.gt.f32.partialorder %v224, 0.0
  %v227 = vmin.f32 %v223, 0.0
  %v228 = vmin.f32 %v224, 0.0
  %v229 = vmul.f32 %v227, 1.442695
  %v230 = vpow.pop %v229
  %v231 = vmul.f32 %v228, 1.442695
  %v232 = vpow.pop %v231
  %v233 = vsub.f32 %v230, 1.0
  %v234 = vsub.f32 %v232, 1.0
  %v235 = vsel %vm225, %v223, %v233
  %v236 = vsel %vm226, %v224, %v234
  %v237 = vld [vmem:[%s5] sm:$0xff]
  %v238 = vld [vmem:[%s5 + $0x8] sm:$0xff]
  %v239 = vld [vmem:[%s5 + $0x10] sm:$0xff]
  %v240 = vld [vmem:[%s5 + $0x18] sm:$0xff]
  %v241 = vld [vmem:[%s6] sm:$0x1]
  %v243 = vlaneseq
  %v244 = vshrl.u32 %v243, 7
  %v245 = vsub.s32 0, %v244
  %v246 = vrot.slane %v241, %v245
  %vm248 = vcmask 261120
  %v250 = vsel %vm248, %v235, 0
  %v253 = vsel %vm248, %v236, 0
  %255 = vmatprep.subr.mxu0 0.0
  %256 = vmatpush1.msra.mxu0 %v237
  %257 = vmatprep.subr.mxu0 0.0
  %258 = vmatpush1.msra.mxu0 %v238
  %259 = vmatprep.subr.mxu0 0.0
  %260 = vmatpush1.msra.mxu0 %v239
  %261 = vmatprep.subr.mxu0 0.0
  %262 = vmatpush1.msra.mxu0 %v240
  %263 = vmatprep.subr.mxu0 0.0
  %264 = vmatpush1.msra.mxu0 0.0
  %265 = vmatprep.subr.mxu0 0.0
  %266 = vmatpush1.msra.mxu0 0.0
  %267 = vmatprep.subr.mxu0 0.0
  %268 = vmatpush1.msra.mxu0 0.0
  %269 = vmatprep.subr.mxu0 0.0
  %270 = vmatpush1.msra.mxu0 0.0
  %271 = vmatprep.subr.mxu0 0.0
  %272 = vmatpush1.msra.mxu0 0.0
  %273 = vmatprep.subr.mxu0 0.0
  %274 = vmatpush1.msra.mxu0 0.0
  %275 = vmatprep.subr.mxu0 0.0
  %276 = vmatpush1.msra.mxu0 0.0
  %277 = vmatprep.subr.mxu0 0.0
  %278 = vmatpush1.msra.mxu0 0.0
  %279 = vmatprep.subr.mxu0 0.0
  %280 = vmatpush1.msra.mxu0 0.0
  %281 = vmatprep.subr.mxu0 0.0
  %282 = vmatpush1.msra.mxu0 0.0
  %283 = vmatprep.subr.mxu0 0.0
  %284 = vmatpush1.msra.mxu0 0.0
  %285 = vmatprep.subr.mxu0 0.0
  %286 = vmatpush1.msra.mxu0 0.0
  %287 = vmatprep.subr.mxu0 0.0
  %288 = vmatpush1.msra.mxu0 0.0
  %289 = vmatprep.subr.mxu0 0.0
  %290 = vmatpush1.msra.mxu0 0.0
  %291 = vmatprep.subr.mxu0 0.0
  %292 = vmatpush1.msra.mxu0 0.0
  %293 = vmatprep.subr.mxu0 0.0
  %294 = vmatpush1.msra.mxu0 0.0
  %295 = vmatprep.subr.mxu0 0.0
  %296 = vmatpush1.msra.mxu0 0.0
  %297 = vmatprep.subr.mxu0 0.0
  %298 = vmatpush1.msra.mxu0 0.0
  %299 = vmatprep.subr.mxu0 0.0
  %300 = vmatpush1.msra.mxu0 0.0
  %301 = vmatprep.subr.mxu0 0.0
  %302 = vmatpush1.msra.mxu0 0.0
  %303 = vmatprep.subr.mxu0 0.0
  %304 = vmatpush1.msra.mxu0 0.0
  %305 = vmatprep.subr.mxu0 0.0
  %306 = vmatpush1.msra.mxu0 0.0
  %307 = vmatprep.subr.mxu0 0.0
  %308 = vmatpush1.msra.mxu0 0.0
  %309 = vmatprep.subr.mxu0 0.0
  %310 = vmatpush1.msra.mxu0 0.0
  %311 = vmatprep.subr.mxu0 0.0
  %312 = vmatpush1.msra.mxu0 0.0
  %313 = vmatprep.subr.mxu0 0.0
  %314 = vmatpush1.msra.mxu0 0.0
  %315 = vmatprep.subr.mxu0 0.0
  %316 = vmatpush1.msra.mxu0 0.0
  %317 = vmatprep.subr.mxu0 0.0
  %318 = vmatpush1.msra.mxu0 0.0
  %319 = vmatprep.mubr.f32.mxu0 0.0
  %320 = vmatmul.mubr.f32.gmra.mrb[0].mxu0 %v250
  %v321 = vpop.f32.mrb[0].mxu0
  %v322 = vadd.f32 %v246, %v321
  %v323 = vpop.f32.mrb[0].mxu0
  %324 = vmatprep.mubr.f32.mxu0 0.0
  %325 = vmatmul.mubr.f32.gmra.mrb[0].mxu0 %v253
  %v326 = vpop.f32.mrb[0].mxu0
  %v327 = vadd.f32 %v246, %v326
  %v328 = vpop.f32.mrb[0].mxu0
  %329 = vdwg.mxu0
  %vm330 = vcmp.gt.f32.partialorder %v322, 0.0
  %vm331 = vcmp.gt.f32.partialorder %v327, 0.0
  %v332 = vmin.f32 %v322, 0.0
  %v333 = vmin.f32 %v327, 0.0
  %v334 = vmul.f32 %v332, 1.442695
  %v335 = vpow.pop %v334
  %v336 = vmul.f32 %v333, 1.442695
  %v337 = vpow.pop %v336
  %v338 = vsub.f32 %v335, 1.0
  %v339 = vsub.f32 %v337, 1.0
  %v340 = vsel %vm330, %v322, %v338
  %v341 = vsel %vm331, %v327, %v339
  %v342 = vld [vmem:[%s7] sm:$0xff]
  %v343 = vld [vmem:[%s7 + $0x8] sm:$0xff]
  %v344 = vld [vmem:[%s7 + $0x10] sm:$0xff]
  %v345 = vld [vmem:[%s7 + $0x18] sm:$0xff]
  %v346 = vld [vmem:[%s8] sm:$0x1]
  %v348 = vlaneseq
  %v349 = vshrl.u32 %v348, 7
  %v350 = vsub.s32 0, %v349
  %v351 = vrot.slane %v346, %v350
  %v354 = vsel %vm248, %v340, 0
  %v357 = vsel %vm248, %v341, 0
  %359 = vmatprep.subr.mxu0 0.0
  %360 = vmatpush1.msra.mxu0 %v342
  %361 = vmatprep.subr.mxu0 0.0
  %362 = vmatpush1.msra.mxu0 %v343
  %363 = vmatprep.subr.mxu0 0.0
  %364 = vmatpush1.msra.mxu0 %v344
  %365 = vmatprep.subr.mxu0 0.0
  %366 = vmatpush1.msra.mxu0 %v345
  %367 = vmatprep.subr.mxu0 0.0
  %368 = vmatpush1.msra.mxu0 0.0
  %369 = vmatprep.subr.mxu0 0.0
  %370 = vmatpush1.msra.mxu0 0.0
  %371 = vmatprep.subr.mxu0 0.0
  %372 = vmatpush1.msra.mxu0 0.0
  %373 = vmatprep.subr.mxu0 0.0
  %374 = vmatpush1.msra.mxu0 0.0
  %375 = vmatprep.subr.mxu0 0.0
  %376 = vmatpush1.msra.mxu0 0.0
  %377 = vmatprep.subr.mxu0 0.0
  %378 = vmatpush1.msra.mxu0 0.0
  %379 = vmatprep.subr.mxu0 0.0
  %380 = vmatpush1.msra.mxu0 0.0
  %381 = vmatprep.subr.mxu0 0.0
  %382 = vmatpush1.msra.mxu0 0.0
  %383 = vmatprep.subr.mxu0 0.0
  %384 = vmatpush1.msra.mxu0 0.0
  %385 = vmatprep.subr.mxu0 0.0
  %386 = vmatpush1.msra.mxu0 0.0
  %387 = vmatprep.subr.mxu0 0.0
  %388 = vmatpush1.msra.mxu0 0.0
  %389 = vmatprep.subr.mxu0 0.0
  %390 = vmatpush1.msra.mxu0 0.0
  %391 = vmatprep.subr.mxu0 0.0
  %392 = vmatpush1.msra.mxu0 0.0
  %393 = vmatprep.subr.mxu0 0.0
  %394 = vmatpush1.msra.mxu0 0.0
  %395 = vmatprep.subr.mxu0 0.0
  %396 = vmatpush1.msra.mxu0 0.0
  %397 = vmatprep.subr.mxu0 0.0
  %398 = vmatpush1.msra.mxu0 0.0
  %399 = vmatprep.subr.mxu0 0.0
  %400 = vmatpush1.msra.mxu0 0.0
  %401 = vmatprep.subr.mxu0 0.0
  %402 = vmatpush1.msra.mxu0 0.0
  %403 = vmatprep.subr.mxu0 0.0
  %404 = vmatpush1.msra.mxu0 0.0
  %405 = vmatprep.subr.mxu0 0.0
  %406 = vmatpush1.msra.mxu0 0.0
  %407 = vmatprep.subr.mxu0 0.0
  %408 = vmatpush1.msra.mxu0 0.0
  %409 = vmatprep.subr.mxu0 0.0
  %410 = vmatpush1.msra.mxu0 0.0
  %411 = vmatprep.subr.mxu0 0.0
  %412 = vmatpush1.msra.mxu0 0.0
  %413 = vmatprep.subr.mxu0 0.0
  %414 = vmatpush1.msra.mxu0 0.0
  %415 = vmatprep.subr.mxu0 0.0
  %416 = vmatpush1.msra.mxu0 0.0
  %417 = vmatprep.subr.mxu0 0.0
  %418 = vmatpush1.msra.mxu0 0.0
  %419 = vmatprep.subr.mxu0 0.0
  %420 = vmatpush1.msra.mxu0 0.0
  %421 = vmatprep.subr.mxu0 0.0
  %422 = vmatpush1.msra.mxu0 0.0
  %423 = vmatprep.mubr.f32.mxu0 0.0
  %424 = vmatmul.mubr.f32.gmra.mrb[0].mxu0 %v354
  %v425 = vpop.f32.mrb[0].mxu0
  %v426 = vadd.f32 %v351, %v425
  %v427 = vpop.f32.mrb[0].mxu0
  %428 = vmatprep.mubr.f32.mxu0 0.0
  %429 = vmatmul.mubr.f32.gmra.mrb[0].mxu0 %v357
  %v430 = vpop.f32.mrb[0].mxu0
  %v431 = vadd.f32 %v351, %v430
  %v432 = vpop.f32.mrb[0].mxu0
  %433 = vdwg.mxu0
  %v434 = vld [vmem:[%s9] sm:$0xff]
  %v435 = vld [vmem:[%s9 + $0x8] sm:$0xff]
  %v436 = vld [vmem:[%s9 + $0x10] sm:$0xff]
  %v437 = vld [vmem:[%s9 + $0x18] sm:$0xff]
  %v438 = vld [vmem:[%s10] sm:$0x1]
  %v440 = vlaneseq
  %v441 = vshrl.u32 %v440, 7
  %v442 = vsub.s32 0, %v441
  %v443 = vrot.slane %v438, %v442
  %v446 = vsel %vm248, %v426, 0
  %v449 = vsel %vm248, %v431, 0
  %451 = vmatprep.subr.mxu0 0.0
  %452 = vmatpush1.msra.mxu0 %v434
  %453 = vmatprep.subr.mxu0 0.0
  %454 = vmatpush1.msra.mxu0 %v435
  %455 = vmatprep.subr.mxu0 0.0
  %456 = vmatpush1.msra.mxu0 %v436
  %457 = vmatprep.subr.mxu0 0.0
  %458 = vmatpush1.msra.mxu0 %v437
  %459 = vmatprep.subr.mxu0 0.0
  %460 = vmatpush1.msra.mxu0 0.0
  %461 = vmatprep.subr.mxu0 0.0
  %462 = vmatpush1.msra.mxu0 0.0
  %463 = vmatprep.subr.mxu0 0.0
  %464 = vmatpush1.msra.mxu0 0.0
  %465 = vmatprep.subr.mxu0 0.0
  %466 = vmatpush1.msra.mxu0 0.0
  %467 = vmatprep.subr.mxu0 0.0
  %468 = vmatpush1.msra.mxu0 0.0
  %469 = vmatprep.subr.mxu0 0.0
  %470 = vmatpush1.msra.mxu0 0.0
  %471 = vmatprep.subr.mxu0 0.0
  %472 = vmatpush1.msra.mxu0 0.0
  %473 = vmatprep.subr.mxu0 0.0
  %474 = vmatpush1.msra.mxu0 0.0
  %475 = vmatprep.subr.mxu0 0.0
  %476 = vmatpush1.msra.mxu0 0.0
  %477 = vmatprep.subr.mxu0 0.0
  %478 = vmatpush1.msra.mxu0 0.0
  %479 = vmatprep.subr.mxu0 0.0
  %480 = vmatpush1.msra.mxu0 0.0
  %481 = vmatprep.subr.mxu0 0.0
  %482 = vmatpush1.msra.mxu0 0.0
  %483 = vmatprep.subr.mxu0 0.0
  %484 = vmatpush1.msra.mxu0 0.0
  %485 = vmatprep.subr.mxu0 0.0
  %486 = vmatpush1.msra.mxu0 0.0
  %487 = vmatprep.subr.mxu0 0.0
  %488 = vmatpush1.msra.mxu0 0.0
  %489 = vmatprep.subr.mxu0 0.0
  %490 = vmatpush1.msra.mxu0 0.0
  %491 = vmatprep.subr.mxu0 0.0
  %492 = vmatpush1.msra.mxu0 0.0
  %493 = vmatprep.subr.mxu0 0.0
  %494 = vmatpush1.msra.mxu0 0.0
  %495 = vmatprep.subr.mxu0 0.0
  %496 = vmatpush1.msra.mxu0 0.0
  %497 = vmatprep.subr.mxu0 0.0
  %498 = vmatpush1.msra.mxu0 0.0
  %499 = vmatprep.subr.mxu0 0.0
  %500 = vmatpush1.msra.mxu0 0.0
  %501 = vmatprep.subr.mxu0 0.0
  %502 = vmatpush1.msra.mxu0 0.0
  %503 = vmatprep.subr.mxu0 0.0
  %504 = vmatpush1.msra.mxu0 0.0
  %505 = vmatprep.subr.mxu0 0.0
  %506 = vmatpush1.msra.mxu0 0.0
  %507 = vmatprep.subr.mxu0 0.0
  %508 = vmatpush1.msra.mxu0 0.0
  %509 = vmatprep.subr.mxu0 0.0
  %510 = vmatpush1.msra.mxu0 0.0
  %511 = vmatprep.subr.mxu0 0.0
  %512 = vmatpush1.msra.mxu0 0.0
  %513 = vmatprep.subr.mxu0 0.0
  %514 = vmatpush1.msra.mxu0 0.0
  %515 = vmatprep.mubr.f32.mxu0 0.0
  %516 = vmatmul.mubr.f32.gmra.mrb[0].mxu0 %v446
  %v517 = vpop.f32.mrb[0].mxu0
  %v518 = vadd.f32 %v443, %v517
  %v519 = vpop.f32.mrb[0].mxu0
  %520 = vmatprep.mubr.f32.mxu0 0.0
  %521 = vmatmul.mubr.f32.gmra.mrb[0].mxu0 %v449
  %v522 = vpop.f32.mrb[0].mxu0
  %v523 = vadd.f32 %v443, %v522
  %v524 = vpop.f32.mrb[0].mxu0
  %525 = vdwg.mxu0
  %526 = vst.msk [vmem:[%s11] sm:$0xff] %vm46, %v518
  %527 = vst.msk [vmem:[%s11 + $0x8] sm:$0xff] %vm46, %v523
  %vm528 = vcmp.gt.f32.partialorder %v518, 20.0
  %vm529 = vcmp.gt.f32.partialorder %v523, 20.0
  %v530 = vmin.f32 %v518, 20.0
  %v531 = vmin.f32 %v523, 20.0
  %v532 = vmul.f32 %v530, 1.442695
  %v533 = vpow.pop %v532
  %v534 = vmul.f32 %v531, 1.442695
  %v535 = vpow.pop %v534
  %v536 = vadd.f32 %v533, 1.0
  %v537 = vadd.f32 %v535, 1.0
  %v538 = vlog2.pop %v536
  %v539 = vmul.f32 %v538, 0.6931472
  %v540 = vlog2.pop %v537
  %v541 = vmul.f32 %v540, 0.6931472
  %v542 = vsel %vm528, %v518, %v539
  %v543 = vsel %vm529, %v523, %v541
  %546 = vrot.lane.b32.xlu0 %v542, 124
  %v547 = vpop.permute.xlu0 %546
  %548 = vrot.lane.b32.xlu0 %v543, 124
  %v549 = vpop.permute.xlu0 %548
  %552 = vst.msk [vmem:[%s12] sm:$0xff] %vm46, %v547
  %553 = vst.msk [vmem:[%s12 + $0x8] sm:$0xff] %vm46, %v549
  // Predicated region
  $region46: #{mlp_decoder.1} parent=0 // pred_check
    _
  $region47: #{mlp_decoder.1} parent=0 // pred_check_branch
    %555 = sbr.rel (0) target = $region49
  $region48: #{mlp_decoder.1} parent=0 // pred_region
    _
  $region49: #{mlp_decoder.1} parent=0 // pred_fallthru
    _
  // Predicated region
  $region50: #{mlp_decoder.1} parent=0 // pred_check
    _
  $region51: #{mlp_decoder.1} parent=0 // pred_check_branch
    %557 = sbr.rel (0) target = $region53
  $region52: #{mlp_decoder.1} parent=0 // pred_region
    _
  $region53: #{mlp_decoder.1} parent=0 // pred_fallthru
    _
  // Predicated region
  $region54: #{mlp_decoder.1} parent=0 // pred_check
    _
  $region55: #{mlp_decoder.1} parent=0 // pred_check_branch
    %559 = sbr.rel (0) target = $region57
  $region56: #{mlp_decoder.1} parent=0 // pred_region
    _
  $region57: #{mlp_decoder.1} parent=0 // pred_fallthru
    _
  // Predicated region
  $region58: #{mlp_decoder.1} parent=0 // pred_check
    _
  $region59: #{mlp_decoder.1} parent=0 // pred_check_branch
    %561 = sbr.rel (0) target = $region61
  $region60: #{mlp_decoder.1} parent=0 // pred_region
    _
  $region61: #{mlp_decoder.1} parent=0 // pred_fallthru
    _

</llo_original>
